<compile_context>
chip_gen: v6e
topology: v6e:2x2x1
jax: 0.10.0
libtpu: 0.0.40
codegen_flags: <defaults>
</compile_context>

<pallas_src>
import math

import jax
import jax.numpy as jnp
from jax import lax
from jax.experimental import pallas as pl
from jax.experimental.pallas import tpu as pltpu


def _cdiv(a, b):
    return (a + b - 1) // b


def _round_up(x, m):
    return _cdiv(x, m) * m


def _sublane_multiple(dtype):
    return 16 if jnp.dtype(dtype).itemsize == 2 else 8


def _vmem_capacity_bytes(default=64 * 1024 * 1024):
    # Physical VMEM per core: 128 MiB on v5e/v6e, 64 MiB on v7x.  Fall back to
    # the conservative 64 MiB if the query is unavailable.
    try:
        info = pltpu.get_tpu_info()
        return int(getattr(info, "vmem_capacity_bytes", default))
    except Exception:
        return default


def _pick_label_tile(l_padded, label_tile_max):
    # Largest multiple of 128 that divides l_padded and is <= label_tile_max,
    # so the label grid needs no extra padding of the prepared weight.
    m = l_padded // 128
    best = 1
    for d in range(1, m + 1):
        if m % d == 0 and d * 128 <= label_tile_max:
            best = d
    return best * 128


def prepare_sparse_linear_params(weight, bias=None, *, param_dtype=jnp.bfloat16):
    """One-time layout of the SparseLinear parameters for the kernel.

    weight: (L+1, D)  (row L is the padding/dummy label, zero by construction)
    bias:   (L+1, 1) or None
    Returns w_aug: (Dk_pad, L1p) = [W^T ; bias^T ; 0-pad], cast to param_dtype.
    """
    L1, D = weight.shape
    sub = _sublane_multiple(param_dtype)
    Dk_pad = _round_up(D + 1, sub)          # +1 contraction row for the bias
    L1p = _round_up(L1, 128)

    w_aug = jnp.zeros((Dk_pad, L1p), jnp.float32)
    w_aug = w_aug.at[:D, :L1].set(weight.astype(jnp.float32).T)
    if bias is not None:
        w_aug = w_aug.at[D, :L1].set(bias.astype(jnp.float32).reshape(L1))
    return w_aug.astype(param_dtype)


def _sparse_linear_kernel(shortlist_ref, embed_ref, w_ref, out_ref, acc_ref):
    # shortlist_ref: (TB, S) int32      embed_ref: (TB, Dk_pad) param_dtype
    # w_ref:         (Dk_pad, TL)       out_ref:   (TB, S) f32
    # acc_ref:       (TB, S) f32 VMEM scratch, persists across the label axis.
    l = pl.program_id(1)
    TL = w_ref.shape[1]
    S = shortlist_ref.shape[1]

    @pl.when(l == 0)
    def _():
        acc_ref[...] = jnp.zeros_like(acc_ref)

    # One MXU matmul per (batch tile, label tile): dense logits, bias already
    # folded in via the extra contraction row.
    logits = jnp.dot(embed_ref[...], w_ref[...],
                     preferred_element_type=jnp.float32)           # (TB, TL) f32

    sl = shortlist_ref[...]                                        # (TB, S) int32
    label_ids = l * TL + lax.broadcasted_iota(jnp.int32, (1, TL), 1)

    # Exact per-column select + lane reduce (VPU + XLU, int32/f32 only — v5e
    # safe).  The S column sums are concatenated in registers and accumulated
    # with a single store instead of S narrow masked stores.
    cols = []
    for s in range(S):
        sel = sl[:, s:s + 1]                                       # (TB, 1)
        picked = jnp.where(sel == label_ids, logits, 0.0)          # (TB, TL)
        cols.append(jnp.sum(picked, axis=1, keepdims=True))        # (TB, 1)
    acc_ref[...] += jnp.concatenate(cols, axis=1)                  # (TB, S)

    @pl.when(l == pl.num_programs(1) - 1)
    def _():
        out_ref[...] = acc_ref[...].astype(out_ref.dtype)


def sparse_linear_forward(embed, shortlist, w_aug, *,
                          batch_tile=256, label_tile=2048):
    """embed: (B, D) float, shortlist: (B, S) int, w_aug from prepare_*().

    Returns (B, S) f32 logits for the shortlisted labels (== torch out.squeeze()
    for B > 1, S > 1).
    """
    B, D = embed.shape
    S = shortlist.shape[1]
    Dk_pad, L1p = w_aug.shape
    param_dtype = w_aug.dtype
    assert Dk_pad >= D + 1, "w_aug does not match embed's feature size"

    sub = _sublane_multiple(param_dtype)

    # Batch tiling: at least two grid steps when B allows, so the "parallel"
    # batch axis can be split across v7x's two TensorCores.
    B_sub = _round_up(B, sub)
    nb = _cdiv(B_sub, min(batch_tile, B_sub))
    if nb < 2 and B_sub > sub:
        nb = 2
    TB = _round_up(_cdiv(B_sub, nb), sub)
    nb = _cdiv(B_sub, TB)
    Bp = nb * TB

    # Label tiling (reduction axis, last in the grid).
    TL = _pick_label_tile(L1p, label_tile)
    nl = L1p // TL

    # Per-call input layout: O(B) only; the weight was prepared once.
    embed_p = jnp.zeros((Bp, Dk_pad), jnp.float32)
    embed_p = embed_p.at[:B, :D].set(embed.astype(jnp.float32))
    embed_p = embed_p.at[:, D].set(1.0)      # bias column (pad rows discarded)
    embed_p = embed_p.astype(param_dtype)
    sl_p = jnp.pad(shortlist.astype(jnp.int32), ((0, Bp - B), (0, 0)))

    # VMEM budget: double-buffered per-tile blocks + scratch + in-kernel
    # temporaries, capped at 3/4 of this generation's physical VMEM.
    isz = jnp.dtype(param_dtype).itemsize
    need = (2 * TB * Dk_pad * isz            # embed blocks
            + 2 * TB * S * 4                 # shortlist blocks
            + 2 * Dk_pad * TL * isz          # streamed weight blocks
            + 2 * TB * S * 4                 # output blocks
            + TB * S * 4                     # accumulator scratch
            + 8 * TB * TL * 4)               # logits + selection temporaries
    vmem_limit = int(min(need + (2 << 20), (3 * _vmem_capacity_bytes()) // 4))
    vmem_limit = max(vmem_limit, 4 << 20)

    out = pl.pallas_call(
        _sparse_linear_kernel,
        out_shape=jax.ShapeDtypeStruct((Bp, S), jnp.float32),
        grid=(nb, nl),
        in_specs=[
            pl.BlockSpec((TB, S), lambda i, l: (i, 0)),        # shortlist tile
            pl.BlockSpec((TB, Dk_pad), lambda i, l: (i, 0)),   # embed tile
            pl.BlockSpec((Dk_pad, TL), lambda i, l: (0, l)),   # W^T label tile
        ],
        out_specs=pl.BlockSpec((TB, S), lambda i, l: (i, 0)),
        scratch_shapes=[pltpu.VMEM((TB, S), jnp.float32)],
        compiler_params=pltpu.CompilerParams(
            dimension_semantics=("parallel", "arbitrary"),
            vmem_limit_bytes=vmem_limit,
        ),
    )(sl_p, embed_p, w_aug)

    return out[:B]


if __name__ == "__main__":
    key = jax.random.PRNGKey(0)

    input_size = 32            # D
    output_size = 63           # torch rows = output_size + 1 = 64, padding_idx = 63
    L1 = output_size + 1
    padding_idx = output_size
    B, S = 4, 8

    kw, kb, ke, ks = jax.random.split(key, 4)

    # Deterministic init matching reset_parameters():
    # kaiming_uniform_(a=sqrt(5)) on 2-D weight -> U(-1/sqrt(fan_in), 1/sqrt(fan_in)),
    # bias ~ U(-bound, bound), and the dummy/padding row zeroed.
    bound = 1.0 / math.sqrt(input_size)
    weight = jax.random.uniform(kw, (L1, input_size), jnp.float32, -bound, bound)
    bias = jax.random.uniform(kb, (L1, 1), jnp.float32, -bound, bound)
    weight = weight.at[padding_idx].set(0.0)
    bias = bias.at[padding_idx].set(0.0)

    embed = jax.random.normal(ke, (B, input_size), jnp.float32)
    shortlist = jax.random.randint(ks, (B, S), 0, L1, jnp.int32)
    shortlist = shortlist.at[0, -1].set(padding_idx)   # exercise the dummy label

    # One-time parameter layout (hoisted out of the forward path), then forward.
    w_aug = prepare_sparse_linear_params(weight, bias, param_dtype=jnp.bfloat16)
    fwd = jax.jit(sparse_linear_forward)
    out = jax.block_until_ready(fwd(embed, shortlist, w_aug))

    # Pure-JAX reference with the same bf16-quantized inputs (f32 accumulation).
    wq = weight.astype(jnp.bfloat16).astype(jnp.float32)
    bq = bias.astype(jnp.bfloat16).astype(jnp.float32)
    eq = embed.astype(jnp.bfloat16).astype(jnp.float32)
    ref = jnp.einsum('bd,bsd->bs', eq, wq[shortlist],
                     precision=jax.lax.Precision.HIGHEST) + bq[shortlist, 0]

    assert out.shape == (B, S), out.shape
    err = float(jnp.max(jnp.abs(out - ref)))
    assert jnp.allclose(out, ref, atol=5e-3, rtol=5e-3), err

    print("KERNEL_OK")
</pallas_src>

<mosaic_0001>
module attributes {stable_mosaic.version = 11 : i64} {
  func.func @_sparse_linear_kernel(%arg0: i32, %arg1: i32, %arg2: memref<16x8xi32, #tpu.memory_space<vmem>>, %arg3: memref<16x48xbf16, #tpu.memory_space<vmem>>, %arg4: memref<48x128xbf16, #tpu.memory_space<vmem>>, %arg5: memref<16x8xf32, #tpu.memory_space<vmem>>, %arg6: memref<16x8xf32, #tpu.memory_space<vmem>>) attributes {dimension_semantics = [#tpu.dimension_semantics<parallel>, #tpu.dimension_semantics<arbitrary>], iteration_bounds = array<i64: 1, 1>, scalar_prefetch = 0 : i64, scratch_operands = 1 : i64, tpu.core_type = #tpu.core_type<tc>, window_params = [{transform_indices = @transform_0, window_bounds = array<i64: 16, 8>}, {transform_indices = @transform_1, window_bounds = array<i64: 16, 48>}, {transform_indices = @transform_2, window_bounds = array<i64: 48, 128>}, {transform_indices = @transform_3, window_bounds = array<i64: 16, 8>}]} {
    %c0_i32 = arith.constant 0 : i32
    %0 = arith.cmpi eq, %arg1, %c0_i32 : i32
    %1 = arith.extui %0 : i1 to i32
    %c0_i32_0 = arith.constant 0 : i32
    %2 = arith.cmpi ne, %1, %c0_i32_0 : i32
    scf.if %2 {
      %cst_28 = arith.constant 0.000000e+00 : f32
      %82 = vector.broadcast %cst_28 : f32 to vector<16x8xf32>
      %c0_29 = arith.constant 0 : index
      %c0_30 = arith.constant 0 : index
      %83 = vector.load %arg6[%c0_29, %c0_30] : memref<16x8xf32, #tpu.memory_space<vmem>>, vector<16x8xf32>
      tpu.vector_store %arg6[%c0_29, %c0_30], %82 {strides = array<i32>} : memref<16x8xf32, #tpu.memory_space<vmem>>, vector<16x8xf32>,
    } else {
    }
    %c0 = arith.constant 0 : index
    %c0_1 = arith.constant 0 : index
    %3 = vector.load %arg3[%c0, %c0_1] : memref<16x48xbf16, #tpu.memory_space<vmem>>, vector<16x48xbf16>
    %c0_2 = arith.constant 0 : index
    %c0_3 = arith.constant 0 : index
    %4 = vector.load %arg4[%c0_2, %c0_3] : memref<48x128xbf16, #tpu.memory_space<vmem>>, vector<48x128xbf16>
    %cst = arith.constant dense<0.000000e+00> : vector<16x128xf32>
    %5 = tpu.matmul %3, %4, %cst {dimension_numbers = #tpu.dot_dimension_numbers<[1], [0], [0], [1], [0, 0, 1, 1], [], []>} : vector<16x48xbf16>, vector<48x128xbf16>, vector<16x128xf32> -> vector<16x128xf32>
    %c0_4 = arith.constant 0 : index
    %c0_5 = arith.constant 0 : index
    %6 = vector.load %arg2[%c0_4, %c0_5] : memref<16x8xi32, #tpu.memory_space<vmem>>, vector<16x8xi32>
    %c128_i32 = arith.constant 128 : i32
    %7 = arith.muli %arg1, %c128_i32 : i32
    %8 = tpu.iota {dimensions = array<i32: 1>} : vector<1x128xi32>
    %9 = vector.broadcast %7 : i32 to vector<1x128xi32>
    %10 = arith.addi %9, %8 : vector<1x128xi32>
    %11 = vector.extract_strided_slice %6 {offsets = [0, 0], sizes = [16, 1], strides = [1, 1]} : vector<16x8xi32> to vector<16x1xi32>
    %12 = vector.broadcast %11 : vector<16x1xi32> to vector<16x128xi32>
    %13 = vector.broadcast %10 : vector<1x128xi32> to vector<16x128xi32>
    %14 = arith.cmpi eq, %12, %13 : vector<16x128xi32>
    %cst_6 = arith.constant 0.000000e+00 : f32
    %15 = vector.broadcast %cst_6 : f32 to vector<16x128xf32>
    %16 = arith.select %14, %5, %15 : vector<16x128xi1>, vector<16x128xf32>
    %cst_7 = arith.constant dense<0.000000e+00> : vector<16xf32>
    %17 = vector.multi_reduction <add>, %16, %cst_7 [1] : vector<16x128xf32> to vector<16xf32>
    %18 = vector.shape_cast %17 : vector<16xf32> to vector<16x1xf32>
    %19 = vector.extract_strided_slice %6 {offsets = [0, 1], sizes = [16, 1], strides = [1, 1]} : vector<16x8xi32> to vector<16x1xi32>
    %20 = vector.broadcast %19 : vector<16x1xi32> to vector<16x128xi32>
    %21 = vector.broadcast %10 : vector<1x128xi32> to vector<16x128xi32>
    %22 = arith.cmpi eq, %20, %21 : vector<16x128xi32>
    %cst_8 = arith.constant 0.000000e+00 : f32
    %23 = vector.broadcast %cst_8 : f32 to vector<16x128xf32>
    %24 = arith.select %22, %5, %23 : vector<16x128xi1>, vector<16x128xf32>
    %cst_9 = arith.constant dense<0.000000e+00> : vector<16xf32>
    %25 = vector.multi_reduction <add>, %24, %cst_9 [1] : vector<16x128xf32> to vector<16xf32>
    %26 = vector.shape_cast %25 : vector<16xf32> to vector<16x1xf32>
    %27 = vector.extract_strided_slice %6 {offsets = [0, 2], sizes = [16, 1], strides = [1, 1]} : vector<16x8xi32> to vector<16x1xi32>
    %28 = vector.broadcast %27 : vector<16x1xi32> to vector<16x128xi32>
    %29 = vector.broadcast %10 : vector<1x128xi32> to vector<16x128xi32>
    %30 = arith.cmpi eq, %28, %29 : vector<16x128xi32>
    %cst_10 = arith.constant 0.000000e+00 : f32
    %31 = vector.broadcast %cst_10 : f32 to vector<16x128xf32>
    %32 = arith.select %30, %5, %31 : vector<16x128xi1>, vector<16x128xf32>
    %cst_11 = arith.constant dense<0.000000e+00> : vector<16xf32>
    %33 = vector.multi_reduction <add>, %32, %cst_11 [1] : vector<16x128xf32> to vector<16xf32>
    %34 = vector.shape_cast %33 : vector<16xf32> to vector<16x1xf32>
    %35 = vector.extract_strided_slice %6 {offsets = [0, 3], sizes = [16, 1], strides = [1, 1]} : vector<16x8xi32> to vector<16x1xi32>
    %36 = vector.broadcast %35 : vector<16x1xi32> to vector<16x128xi32>
    %37 = vector.broadcast %10 : vector<1x128xi32> to vector<16x128xi32>
    %38 = arith.cmpi eq, %36, %37 : vector<16x128xi32>
    %cst_12 = arith.constant 0.000000e+00 : f32
    %39 = vector.broadcast %cst_12 : f32 to vector<16x128xf32>
    %40 = arith.select %38, %5, %39 : vector<16x128xi1>, vector<16x128xf32>
    %cst_13 = arith.constant dense<0.000000e+00> : vector<16xf32>
    %41 = vector.multi_reduction <add>, %40, %cst_13 [1] : vector<16x128xf32> to vector<16xf32>
    %42 = vector.shape_cast %41 : vector<16xf32> to vector<16x1xf32>
    %43 = vector.extract_strided_slice %6 {offsets = [0, 4], sizes = [16, 1], strides = [1, 1]} : vector<16x8xi32> to vector<16x1xi32>
    %44 = vector.broadcast %43 : vector<16x1xi32> to vector<16x128xi32>
    %45 = vector.broadcast %10 : vector<1x128xi32> to vector<16x128xi32>
    %46 = arith.cmpi eq, %44, %45 : vector<16x128xi32>
    %cst_14 = arith.constant 0.000000e+00 : f32
    %47 = vector.broadcast %cst_14 : f32 to vector<16x128xf32>
    %48 = arith.select %46, %5, %47 : vector<16x128xi1>, vector<16x128xf32>
    %cst_15 = arith.constant dense<0.000000e+00> : vector<16xf32>
    %49 = vector.multi_reduction <add>, %48, %cst_15 [1] : vector<16x128xf32> to vector<16xf32>
    %50 = vector.shape_cast %49 : vector<16xf32> to vector<16x1xf32>
    %51 = vector.extract_strided_slice %6 {offsets = [0, 5], sizes = [16, 1], strides = [1, 1]} : vector<16x8xi32> to vector<16x1xi32>
    %52 = vector.broadcast %51 : vector<16x1xi32> to vector<16x128xi32>
    %53 = vector.broadcast %10 : vector<1x128xi32> to vector<16x128xi32>
    %54 = arith.cmpi eq, %52, %53 : vector<16x128xi32>
    %cst_16 = arith.constant 0.000000e+00 : f32
    %55 = vector.broadcast %cst_16 : f32 to vector<16x128xf32>
    %56 = arith.select %54, %5, %55 : vector<16x128xi1>, vector<16x128xf32>
    %cst_17 = arith.constant dense<0.000000e+00> : vector<16xf32>
    %57 = vector.multi_reduction <add>, %56, %cst_17 [1] : vector<16x128xf32> to vector<16xf32>
    %58 = vector.shape_cast %57 : vector<16xf32> to vector<16x1xf32>
    %59 = vector.extract_strided_slice %6 {offsets = [0, 6], sizes = [16, 1], strides = [1, 1]} : vector<16x8xi32> to vector<16x1xi32>
    %60 = vector.broadcast %59 : vector<16x1xi32> to vector<16x128xi32>
    %61 = vector.broadcast %10 : vector<1x128xi32> to vector<16x128xi32>
    %62 = arith.cmpi eq, %60, %61 : vector<16x128xi32>
    %cst_18 = arith.constant 0.000000e+00 : f32
    %63 = vector.broadcast %cst_18 : f32 to vector<16x128xf32>
    %64 = arith.select %62, %5, %63 : vector<16x128xi1>, vector<16x128xf32>
    %cst_19 = arith.constant dense<0.000000e+00> : vector<16xf32>
    %65 = vector.multi_reduction <add>, %64, %cst_19 [1] : vector<16x128xf32> to vector<16xf32>
    %66 = vector.shape_cast %65 : vector<16xf32> to vector<16x1xf32>
    %67 = vector.extract_strided_slice %6 {offsets = [0, 7], sizes = [16, 1], strides = [1, 1]} : vector<16x8xi32> to vector<16x1xi32>
    %68 = vector.broadcast %67 : vector<16x1xi32> to vector<16x128xi32>
    %69 = vector.broadcast %10 : vector<1x128xi32> to vector<16x128xi32>
    %70 = arith.cmpi eq, %68, %69 : vector<16x128xi32>
    %cst_20 = arith.constant 0.000000e+00 : f32
    %71 = vector.broadcast %cst_20 : f32 to vector<16x128xf32>
    %72 = arith.select %70, %5, %71 : vector<16x128xi1>, vector<16x128xf32>
    %cst_21 = arith.constant dense<0.000000e+00> : vector<16xf32>
    %73 = vector.multi_reduction <add>, %72, %cst_21 [1] : vector<16x128xf32> to vector<16xf32>
    %74 = vector.shape_cast %73 : vector<16xf32> to vector<16x1xf32>
    %c0_22 = arith.constant 0 : index
    %c0_23 = arith.constant 0 : index
    %75 = vector.load %arg6[%c0_22, %c0_23] : memref<16x8xf32, #tpu.memory_space<vmem>>, vector<16x8xf32>
    %76 = tpu.concatenate %18, %26, %34, %42, %50, %58, %66, %74 in 1 : vector<16x1xf32>, vector<16x1xf32>, vector<16x1xf32>, vector<16x1xf32>, vector<16x1xf32>, vector<16x1xf32>, vector<16x1xf32>, vector<16x1xf32> -> vector<16x8xf32>
    %77 = arith.addf %75, %76 : vector<16x8xf32>
    %c0_24 = arith.constant 0 : index
    %c0_25 = arith.constant 0 : index
    %78 = vector.load %arg6[%c0_24, %c0_25] : memref<16x8xf32, #tpu.memory_space<vmem>>, vector<16x8xf32>
    tpu.vector_store %arg6[%c0_24, %c0_25], %77 {strides = array<i32>} : memref<16x8xf32, #tpu.memory_space<vmem>>, vector<16x8xf32>,
    %c0_i32_26 = arith.constant 0 : i32
    %79 = arith.cmpi eq, %arg1, %c0_i32_26 : i32
    %80 = arith.extui %79 : i1 to i32
    %c0_i32_27 = arith.constant 0 : i32
    %81 = arith.cmpi ne, %80, %c0_i32_27 : i32
    scf.if %81 {
      %c0_28 = arith.constant 0 : index
      %c0_29 = arith.constant 0 : index
      %82 = vector.load %arg6[%c0_28, %c0_29] : memref<16x8xf32, #tpu.memory_space<vmem>>, vector<16x8xf32>
      %c0_30 = arith.constant 0 : index
      %c0_31 = arith.constant 0 : index
      %83 = vector.load %arg5[%c0_30, %c0_31] : memref<16x8xf32, #tpu.memory_space<vmem>>, vector<16x8xf32>
      tpu.vector_store %arg5[%c0_30, %c0_31], %82 {strides = array<i32>} : memref<16x8xf32, #tpu.memory_space<vmem>>, vector<16x8xf32>,
    } else {
    }
    return
  }
  func.func @transform_0(%arg0: i32, %arg1: i32) -> (i32, i32) {
    %c0_i32 = arith.constant 0 : i32
    %c0_i32_0 = arith.constant 0 : i32
    return %arg0, %c0_i32 : i32, i32
  }
  func.func @transform_1(%arg0: i32, %arg1: i32) -> (i32, i32) {
    %c0_i32 = arith.constant 0 : i32
    %c0_i32_0 = arith.constant 0 : i32
    return %arg0, %c0_i32 : i32, i32
  }
  func.func @transform_2(%arg0: i32, %arg1: i32) -> (i32, i32) {
    %c0_i32 = arith.constant 0 : i32
    %c0_i32_0 = arith.constant 0 : i32
    return %c0_i32, %arg1 : i32, i32
  }
  func.func @transform_3(%arg0: i32, %arg1: i32) -> (i32, i32) {
    %c0_i32 = arith.constant 0 : i32
    %c0_i32_0 = arith.constant 0 : i32
    return %arg0, %c0_i32 : i32, i32
  }
}

</mosaic_0001>

<llo_original>
// kernel: sparse_linear_forward.1
$region0: #{sparse_linear_forward.1}
  #allocation0 [shape = 'u32[]', space=smem, size = 0x4, offset = 0x4, fixed_abs, tag = 'smem constant byte address 0x4 - core index']
  #allocation1 [shape = 'u32[144,128]{1,0:T(1,128)}', space=vmem, size = 0x12000, scoped, tag = 'internal scratch']
  #allocation2 [shape = 'f32[16,8]{1,0:T(8,128)}', space=vmem, size = 0x2000, scoped, tag = 'scratch operand']
  %s0 = inlined_call_operand.vmem [shape: s32[16,8], index: 0, kind: input, shape index: {}]
  %s1 = inlined_call_operand.vmem [shape: bf16[16,48], index: 1, kind: input, shape index: {}]
  %s2 = inlined_call_operand.vmem [shape: bf16[48,128], index: 2, kind: input, shape index: {}]
  %s3 = inlined_call_operand.vmem [shape: f32[16,8], index: 3, kind: output, shape index: {}]
  %s4 = sld [smem:[#allocation0]]
  $region30: #{sparse_linear_forward.1} parent=0
    _
  %s6 = ssub.s32 1, %s4
  %s7 = scalar_select 0, %s6, %s4
  // Predicated region
  $region2: #{sparse_linear_forward.1} parent=0 // pred_check
    _
  $region3: #{sparse_linear_forward.1} parent=0 // pred_check_branch
    %9 = sbr.rel (0) target = $region5
  $region4: #{sparse_linear_forward.1} parent=0 // pred_region
    _
  $region5: #{sparse_linear_forward.1} parent=0 // pred_fallthru
    _
  // Predicated region
  $region6: #{sparse_linear_forward.1} parent=0 // pred_check
    _
  $region7: #{sparse_linear_forward.1} parent=0 // pred_check_branch
    %11 = sbr.rel (0) target = $region9
  $region8: #{sparse_linear_forward.1} parent=0 // pred_region
    _
  $region9: #{sparse_linear_forward.1} parent=0 // pred_fallthru
    _
  // Predicated region
  $region10: #{sparse_linear_forward.1} parent=0 // pred_check
    _
  $region11: #{sparse_linear_forward.1} parent=0 // pred_check_branch
    %13 = sbr.rel (0) target = $region13
  $region12: #{sparse_linear_forward.1} parent=0 // pred_region
    _
  $region13: #{sparse_linear_forward.1} parent=0 // pred_fallthru
    _
  %p15 = scmp.eq.s32.totalorder 0, 0
  // Predicated region
  $region14: #{sparse_linear_forward.1} parent=0 // pred_check
    %p16 = pneg %p15
  $region15: #{sparse_linear_forward.1} parent=0 // pred_check_branch
    %18 = sbr.rel (%p16) target = $region17
  $region16: #{sparse_linear_forward.1} parent=0 // pred_region
    %vm19 = vcmask 64512
    %20 = vst.msk [vmem:[#allocation2] sm:$0xff] %vm19, 0.0
    %21 = vst.msk [vmem:[#allocation2 + $0x8] sm:$0xff] %vm19, 0.0
  $region17: #{sparse_linear_forward.1} parent=0 // pred_fallthru
    _
  %v22 = vld [vmem:[%s1] sm:$0xf]
  %v23 = vld [vmem:[%s1 + $0x4] sm:$0xf]
  %v24 = vld [vmem:[%s2] sm:$0xf]
  %v25 = vld [vmem:[%s2 + $0x4] sm:$0xf]
  %v26 = vld [vmem:[%s2 + $0x8] sm:$0xf]
  %v27 = vld [vmem:[%s2 + $0xc] sm:$0xf]
  %v28 = vld [vmem:[%s2 + $0x10] sm:$0xf]
  %v29 = vld [vmem:[%s2 + $0x14] sm:$0xf]
  %v32 = vunpack.c.l.b16 %v22
  %v33 = vunpack.c.l.b16 %v23
  %v34 = vpack.c.b16 %v33, %v32
  %v41 = vunpack.c.l.b16 %v24
  %v42 = vunpack.c.l.b16 %v25
  %v43 = vunpack.c.l.b16 %v26
  %v44 = vunpack.c.l.b16 %v27
  %v45 = vunpack.c.l.b16 %v28
  %v46 = vunpack.c.l.b16 %v29
  %v47 = vpack.c.b16 %v42, %v41
  %v48 = vpack.c.b16 %v44, %v43
  %v49 = vpack.c.b16 %v46, %v45
  %vm53 = vcmask 392192
  %v55 = vsel %vm53, %v34, 0
  %57 = vmatprep.subr.bf16.mxu0 0
  %58 = vmatpush1.bf16.msra.mxu0 0
  %59 = vmatprep.subr.bf16.mxu0 0
  %60 = vmatpush1.bf16.msra.mxu0 0
  %61 = vmatprep.subr.bf16.mxu0 0
  %62 = vmatpush1.bf16.msra.mxu0 0
  %63 = vmatprep.subr.bf16.mxu0 0
  %64 = vmatpush1.bf16.msra.mxu0 0
  %65 = vmatprep.subr.bf16.mxu0 0
  %66 = vmatpush1.bf16.msra.mxu0 0
  %67 = vmatprep.subr.bf16.mxu0 0
  %68 = vmatpush1.bf16.msra.mxu0 %v49
  %69 = vmatprep.subr.bf16.mxu0 0
  %70 = vmatpush1.bf16.msra.mxu0 %v48
  %71 = vmatprep.subr.bf16.mxu0 0
  %72 = vmatpush1.bf16.msra.mxu0 %v47
  %73 = vmatprep.subr.bf16.mxu0 0
  %74 = vmatpush2.bf16.msra.mxu0 0
  %75 = vmatprep.subr.bf16.mxu0 0
  %76 = vmatpush2.bf16.msra.mxu0 0
  %77 = vmatprep.subr.bf16.mxu0 0
  %78 = vmatpush2.bf16.msra.mxu0 0
  %79 = vmatprep.subr.bf16.mxu0 0
  %80 = vmatpush2.bf16.msra.mxu0 0
  %81 = vmatprep.subr.bf16.mxu0 0
  %82 = vmatpush2.bf16.msra.mxu0 0
  %83 = vmatprep.subr.bf16.mxu0 0
  %84 = vmatpush2.bf16.msra.mxu0 0
  %85 = vmatprep.subr.bf16.mxu0 0
  %86 = vmatpush2.bf16.msra.mxu0 0
  %87 = vmatprep.subr.bf16.mxu0 0
  %88 = vmatpush2.bf16.msra.mxu0 0
  %89 = vmatprep.mubr.bf16.mxu0 0
  %90 = vmatmul.mubr.bf16.gmra.mxu0 %v55
  %v91 = vpop.f32.mrf.mxu0
  %v92 = vadd.f32 0.0, %v91
  %v93 = vpop.f32.mrf.mxu0
  %v94 = vpop.f32.mrf.mxu0
  %v95 = vadd.f32 0.0, %v94
  %v96 = vpop.f32.mrf.mxu0
  %97 = vdwg.mxu0
  %v98 = vld [vmem:[%s0] sm:$0xff]
  %v99 = vld [vmem:[%s0 + $0x8] sm:$0xff]
  %s100 = smul.u32 0, 128
  %v101 = vlaneseq
  %v102 = vand.u32 %v101, 127
  %v103 = vstv %s100
  %v104 = vadd.s32 %v103, %v102
  %105 = vset.pattern.permute.xlu0 0
  %106 = vperm.xlu0 %105, %v98
  %v107 = vpop.permute.xlu0 %106
  %108 = vset.pattern.permute.xlu0 0
  %109 = vperm.xlu0 %108, %v99
  %v110 = vpop.permute.xlu0 %109
  %vm111 = vcmp.eq.s32.totalorder %v107, %v104
  %vm112 = vcmp.eq.s32.totalorder %v110, %v104
  %v113 = vsel %vm111, %v92, 0.0
  %v114 = vsel %vm112, %v95, 0.0
  %115 = vadd.xlane.f32.xlu0 %v113
  %v116 = vpop.xlane.xlu0 %115
  %117 = vadd.xlane.f32.xlu0 %v114
  %v118 = vpop.xlane.xlu0 %117
  %119 = vset.pattern.permute.xlu0 1
  %120 = vperm.xlu0 %119, %v98
  %v121 = vpop.permute.xlu0 %120
  %122 = vset.pattern.permute.xlu0 1
  %123 = vperm.xlu0 %122, %v99
  %v124 = vpop.permute.xlu0 %123
  %vm125 = vcmp.eq.s32.totalorder %v121, %v104
  %vm126 = vcmp.eq.s32.totalorder %v124, %v104
  %v127 = vsel %vm125, %v92, 0.0
  %v128 = vsel %vm126, %v95, 0.0
  %129 = vadd.xlane.f32.xlu0 %v127
  %v130 = vpop.xlane.xlu0 %129
  %131 = vadd.xlane.f32.xlu0 %v128
  %v132 = vpop.xlane.xlu0 %131
  %133 = vset.pattern.permute.xlu0 2
  %134 = vperm.xlu0 %133, %v98
  %v135 = vpop.permute.xlu0 %134
  %136 = vset.pattern.permute.xlu0 2
  %137 = vperm.xlu0 %136, %v99
  %v138 = vpop.permute.xlu0 %137
  %vm139 = vcmp.eq.s32.totalorder %v135, %v104
  %vm140 = vcmp.eq.s32.totalorder %v138, %v104
  %v141 = vsel %vm139, %v92, 0.0
  %v142 = vsel %vm140, %v95, 0.0
  %143 = vadd.xlane.f32.xlu0 %v141
  %v144 = vpop.xlane.xlu0 %143
  %145 = vadd.xlane.f32.xlu0 %v142
  %v146 = vpop.xlane.xlu0 %145
  %147 = vset.pattern.permute.xlu0 3
  %148 = vperm.xlu0 %147, %v98
  %v149 = vpop.permute.xlu0 %148
  %150 = vset.pattern.permute.xlu0 3
  %151 = vperm.xlu0 %150, %v99
  %v152 = vpop.permute.xlu0 %151
  %vm153 = vcmp.eq.s32.totalorder %v149, %v104
  %vm154 = vcmp.eq.s32.totalorder %v152, %v104
  %v155 = vsel %vm153, %v92, 0.0
  %v156 = vsel %vm154, %v95, 0.0
  %157 = vadd.xlane.f32.xlu0 %v155
  %v158 = vpop.xlane.xlu0 %157
  %159 = vadd.xlane.f32.xlu0 %v156
  %v160 = vpop.xlane.xlu0 %159
  %161 = vset.pattern.permute.xlu0 4
  %162 = vperm.xlu0 %161, %v98
  %v163 = vpop.permute.xlu0 %162
  %164 = vset.pattern.permute.xlu0 4
  %165 = vperm.xlu0 %164, %v99
  %v166 = vpop.permute.xlu0 %165
  %vm167 = vcmp.eq.s32.totalorder %v163, %v104
  %vm168 = vcmp.eq.s32.totalorder %v166, %v104
  %v169 = vsel %vm167, %v92, 0.0
  %v170 = vsel %vm168, %v95, 0.0
  %171 = vadd.xlane.f32.xlu0 %v169
  %v172 = vpop.xlane.xlu0 %171
  %173 = vadd.xlane.f32.xlu0 %v170
  %v174 = vpop.xlane.xlu0 %173
  %175 = vset.pattern.permute.xlu0 5
  %176 = vperm.xlu0 %175, %v98
  %v177 = vpop.permute.xlu0 %176
  %178 = vset.pattern.permute.xlu0 5
  %179 = vperm.xlu0 %178, %v99
  %v180 = vpop.permute.xlu0 %179
  %vm181 = vcmp.eq.s32.totalorder %v177, %v104
  %vm182 = vcmp.eq.s32.totalorder %v180, %v104
  %v183 = vsel %vm181, %v92, 0.0
  %v184 = vsel %vm182, %v95, 0.0
  %185 = vadd.xlane.f32.xlu0 %v183
  %v186 = vpop.xlane.xlu0 %185
  %187 = vadd.xlane.f32.xlu0 %v184
  %v188 = vpop.xlane.xlu0 %187
  %189 = vset.pattern.permute.xlu0 6
  %190 = vperm.xlu0 %189, %v98
  %v191 = vpop.permute.xlu0 %190
  %192 = vset.pattern.permute.xlu0 6
  %193 = vperm.xlu0 %192, %v99
  %v194 = vpop.permute.xlu0 %193
  %vm195 = vcmp.eq.s32.totalorder %v191, %v104
  %vm196 = vcmp.eq.s32.totalorder %v194, %v104
  %v197 = vsel %vm195, %v92, 0.0
  %v198 = vsel %vm196, %v95, 0.0
  %199 = vadd.xlane.f32.xlu0 %v197
  %v200 = vpop.xlane.xlu0 %199
  %201 = vadd.xlane.f32.xlu0 %v198
  %v202 = vpop.xlane.xlu0 %201
  %203 = vset.pattern.permute.xlu0 7
  %204 = vperm.xlu0 %203, %v98
  %v205 = vpop.permute.xlu0 %204
  %206 = vset.pattern.permute.xlu0 7
  %207 = vperm.xlu0 %206, %v99
  %v208 = vpop.permute.xlu0 %207
  %vm209 = vcmp.eq.s32.totalorder %v205, %v104
  %vm210 = vcmp.eq.s32.totalorder %v208, %v104
  %v211 = vsel %vm209, %v92, 0.0
  %v212 = vsel %vm210, %v95, 0.0
  %213 = vadd.xlane.f32.xlu0 %v211
  %v214 = vpop.xlane.xlu0 %213
  %215 = vadd.xlane.f32.xlu0 %v212
  %v216 = vpop.xlane.xlu0 %215
  %v217 = vld [vmem:[#allocation2] sm:$0xff]
  %v218 = vld [vmem:[#allocation2 + $0x8] sm:$0xff]
  %vm219 = vcmask 7168
  %v220 = vsel %vm219, %v116, %v130
  %v221 = vsel %vm219, %v118, %v132
  %vm222 = vcmask 15360
  %v223 = vsel %vm222, %v220, %v144
  %v224 = vsel %vm222, %v221, %v146
  %vm225 = vcmask 23552
  %v226 = vsel %vm225, %v223, %v158
  %v227 = vsel %vm225, %v224, %v160
  %vm228 = vcmask 31744
  %v229 = vsel %vm228, %v226, %v172
  %v230 = vsel %vm228, %v227, %v174
  %vm231 = vcmask 39936
  %v232 = vsel %vm231, %v229, %v186
  %v233 = vsel %vm231, %v230, %v188
  %vm234 = vcmask 48128
  %v235 = vsel %vm234, %v232, %v200
  %v236 = vsel %vm234, %v233, %v202
  %vm237 = vcmask 56320
  %v238 = vsel %vm237, %v235, %v214
  %v239 = vsel %vm237, %v236, %v216
  %v240 = vadd.f32 %v217, %v238
  %v241 = vadd.f32 %v218, %v239
  %vm242 = vcmask 64512
  %243 = vst.msk [vmem:[#allocation2] sm:$0xff] %vm242, %v240
  %244 = vst.msk [vmem:[#allocation2 + $0x8] sm:$0xff] %vm242, %v241
  // Predicated region
  $region18: #{sparse_linear_forward.1} parent=0 // pred_check
    %p245 = pneg %p15
  $region19: #{sparse_linear_forward.1} parent=0 // pred_check_branch
    %247 = sbr.rel (%p245) target = $region21
  $region20: #{sparse_linear_forward.1} parent=0 // pred_region
    %v248 = vld [vmem:[#allocation2] sm:$0xff]
    %v249 = vld [vmem:[#allocation2 + $0x8] sm:$0xff]
    %250 = vst.msk [vmem:[%s3] sm:$0xff] %vm242, %v248
    %251 = vst.msk [vmem:[%s3 + $0x8] sm:$0xff] %vm242, %v249
  $region21: #{sparse_linear_forward.1} parent=0 // pred_fallthru
    _
  // Predicated region
  $region22: #{sparse_linear_forward.1} parent=0 // pred_check
    _
  $region23: #{sparse_linear_forward.1} parent=0 // pred_check_branch
    %253 = sbr.rel (0) target = $region25
  $region24: #{sparse_linear_forward.1} parent=0 // pred_region
    _
  $region25: #{sparse_linear_forward.1} parent=0 // pred_fallthru
    _
  // Predicated region
  $region26: #{sparse_linear_forward.1} parent=0 // pred_check
    _
  $region27: #{sparse_linear_forward.1} parent=0 // pred_check_branch
    %255 = sbr.rel (0) target = $region29
  $region28: #{sparse_linear_forward.1} parent=0 // pred_region
    _
  $region29: #{sparse_linear_forward.1} parent=0 // pred_fallthru
    _

</llo_original>
